<compile_context>
chip_gen: v6e
topology: v6e:2x2x1
jax: 0.10.0
libtpu: 0.0.40
codegen_flags: <defaults>
</compile_context>

<pallas_src>
import math

import jax
import jax.numpy as jnp
from jax import lax
from jax.experimental import pallas as pl
from jax.experimental.pallas import tpu as pltpu

PATCH_SIZE = 4
_LANE = 128


# ------------------------------ small helpers -------------------------------
def _pick_chunk(rows, max_chunk):
    """Largest multiple-of-8 divisor of `rows` that is <= max_chunk (rows % 8 == 0)."""
    best = 8
    for c in range(8, min(rows, max_chunk) + 1, 8):
        if rows % c == 0:
            best = c
    return best


def _accumulate(n, body, init):
    """Run `body` n times accumulating a carry; unroll short fixed trip counts."""
    if n == 1:
        return body(0, init)
    if n <= 8:
        return lax.fori_loop(0, n, body, init, unroll=True)
    return lax.fori_loop(0, n, body, init)


def _dice_chunk_body(sp_ref, sm_ref, chunk):
    def body(i, acc):
        a_acc, b_acc, c_acc = acc
        r0 = i * chunk
        if not isinstance(r0, int):
            r0 = pl.multiple_of(r0, chunk)
        sp = sp_ref[0, pl.ds(r0, chunk), :].astype(jnp.float32)   # (chunk, 128)
        sm = sm_ref[0, pl.ds(r0, chunk), :].astype(jnp.float32)
        p = jax.nn.sigmoid(sp)
        t = 1.0 - sm                     # target = 1 - seg_masks (matches the spec)
        a_acc = a_acc + jnp.sum(p * t, axis=0, keepdims=True)
        b_acc = b_acc + jnp.sum(p * p, axis=0, keepdims=True)
        c_acc = c_acc + jnp.sum(t * t, axis=0, keepdims=True)
        return a_acc, b_acc, c_acc
    return body


# ------------------------------ kernel bodies -------------------------------
def _make_fused_kernel(C, Rm, chunk_m, Rs, chunk_s):
    n_m = Rm // chunk_m
    n_s = Rs // chunk_s

    def kernel(img_ref, pred_ref, mask_ref, sp_ref, sm_ref, mim_ref, dice_ref):
        # ---- masked-L1 MIM lane-partials, chunked over sublane rows ----
        def mim_body(i, acc):
            r0 = i * chunk_m
            if not isinstance(r0, int):
                r0 = pl.multiple_of(r0, chunk_m)
            img = img_ref[0, :, pl.ds(r0, chunk_m), :].astype(jnp.float32)   # (C, chunk, 128)
            prd = pred_ref[0, :, pl.ds(r0, chunk_m), :].astype(jnp.float32)
            msk = mask_ref[0, pl.ds(r0, chunk_m), :].astype(jnp.float32)     # (chunk, 128)
            d = jnp.abs(img - prd) * msk[None, :, :]
            return acc + jnp.sum(d.reshape(C * chunk_m, _LANE), axis=0, keepdims=True)

        num = _accumulate(n_m, mim_body, jnp.zeros((1, _LANE), jnp.float32))
        mim_ref[0] = num                                                     # (1, 128)

        # ---- dice lane-partials (a, b, c stacked along the sublane axis) ----
        zero = jnp.zeros((1, _LANE), jnp.float32)
        a, b, c = _accumulate(n_s, _dice_chunk_body(sp_ref, sm_ref, chunk_s),
                              (zero, zero, zero))
        dice_ref[0] = jnp.concatenate([a, b, c], axis=0)                     # (3, 128)

    return kernel


def _make_dice_kernel(Rs, chunk_s):
    n_s = Rs // chunk_s

    def kernel(sp_ref, sm_ref, dice_ref):
        zero = jnp.zeros((1, _LANE), jnp.float32)
        a, b, c = _accumulate(n_s, _dice_chunk_body(sp_ref, sm_ref, chunk_s),
                              (zero, zero, zero))
        dice_ref[0] = jnp.concatenate([a, b, c], axis=0)

    return kernel


# ------------------------------ input plumbing ------------------------------
def _prep_mim(images, mim_preds, masks):
    B, C, H, W = images.shape
    HW = H * W
    pad = (-HW) % 1024                       # lane- AND sublane-dense (rows % 8 == 0)
    Rm = (HW + pad) // _LANE

    def to_blocks(x):
        x = x.reshape(B, C, HW)
        if pad:
            x = jnp.pad(x, ((0, 0), (0, 0), (0, pad)))        # zeros -> no contribution
        return x.reshape(B, C, Rm, _LANE)

    img = to_blocks(images)                  # native dtype (bf16 stays bf16 in HBM)
    prd = to_blocks(mim_preds)

    Hp, Wp = masks.shape[1], masks.shape[2]
    # repeat_interleave(p, 1).repeat_interleave(p, 2) as a single broadcast+reshape,
    # stored in the narrow image dtype (exact for 0/1 masks).
    m = jnp.broadcast_to(masks[:, :, None, :, None],
                         (B, Hp, PATCH_SIZE, Wp, PATCH_SIZE)).reshape(B, HW)
    m = m.astype(images.dtype)
    if pad:
        m = jnp.pad(m, ((0, 0), (0, pad)))                    # zeros -> no contribution
    return img, prd, m.reshape(B, Rm, _LANE), Rm


def _prep_seg(seg_preds, seg_masks):
    B = seg_preds.shape[0]
    N = math.prod(seg_preds.shape[1:])
    pad = (-N) % 1024
    Rs = (N + pad) // _LANE
    sp = seg_preds.reshape(B, N)
    sm = seg_masks.reshape(B, N).astype(seg_preds.dtype)
    if pad:
        # Neutralize padded elements: sigmoid(-1e9) == 0, target = 1 - 1 == 0.
        sp = jnp.pad(sp, ((0, 0), (0, pad)), constant_values=-1e9)
        sm = jnp.pad(sm, ((0, 0), (0, pad)), constant_values=1.0)
    return sp.reshape(B, Rs, _LANE), sm.reshape(B, Rs, _LANE), Rs


def _finish_dice(dice_p):
    a = jnp.sum(dice_p[:, 0, :], axis=-1)
    b = jnp.sum(dice_p[:, 1, :], axis=-1) + 0.001
    c = jnp.sum(dice_p[:, 2, :], axis=-1) + 0.001
    return 1.0 - jnp.mean(2.0 * a / (b + c))


# ------------------------------- pallas calls --------------------------------
def _segmim_fused(images, mim_preds, masks, seg_preds, seg_masks):
    B, C = images.shape[0], images.shape[1]
    img, prd, m, Rm = _prep_mim(images, mim_preds, masks)
    sp, sm, Rs = _prep_seg(seg_preds, seg_masks)

    # Keep ~<=32 live f32 sublanes per intermediate in the MIM chunk (C * chunk_m rows).
    chunk_m = _pick_chunk(Rm, max(8, (32 // max(C, 1)) // 8 * 8))
    chunk_s = _pick_chunk(Rs, 32)
    kernel = _make_fused_kernel(C, Rm, chunk_m, Rs, chunk_s)

    f32 = jnp.float32
    mim_p, dice_p = pl.pallas_call(
        kernel,
        out_shape=(jax.ShapeDtypeStruct((B, 1, _LANE), f32),
                   jax.ShapeDtypeStruct((B, 3, _LANE), f32)),
        grid_spec=pltpu.PrefetchScalarGridSpec(
            num_scalar_prefetch=0,
            grid=(B,),
            in_specs=[
                pl.BlockSpec((1, C, Rm, _LANE), lambda i: (i, 0, 0, 0)),
                pl.BlockSpec((1, C, Rm, _LANE), lambda i: (i, 0, 0, 0)),
                pl.BlockSpec((1, Rm, _LANE), lambda i: (i, 0, 0)),
                pl.BlockSpec((1, Rs, _LANE), lambda i: (i, 0, 0)),
                pl.BlockSpec((1, Rs, _LANE), lambda i: (i, 0, 0)),
            ],
            out_specs=(
                pl.BlockSpec((1, 1, _LANE), lambda i: (i, 0, 0)),
                pl.BlockSpec((1, 3, _LANE), lambda i: (i, 0, 0)),
            ),
        ),
        compiler_params=pltpu.CompilerParams(
            dimension_semantics=("parallel",),
            vmem_limit_bytes=32 * 1024 * 1024,   # explicit budget: safe on v5e/v6e/v7x
        ),
    )(img, prd, m, sp, sm)

    num = jnp.sum(mim_p)
    # Exact: each tiny-mask element is replicated PATCH_SIZE**2 times by repeat_interleave.
    den = (PATCH_SIZE ** 2) * jnp.sum(masks.astype(jnp.float32))
    # NOTE: the PyTorch spec hard-codes "/ 3" (in_chans fixed to 3); kept verbatim.
    mim = num / (den + 1e-5) / 3.0
    textseg = _finish_dice(dice_p)
    return mim, textseg


def _dice_only(seg_preds, seg_masks):
    B = seg_preds.shape[0]
    sp, sm, Rs = _prep_seg(seg_preds, seg_masks)
    chunk_s = _pick_chunk(Rs, 32)
    kernel = _make_dice_kernel(Rs, chunk_s)

    dice_p = pl.pallas_call(
        kernel,
        out_shape=jax.ShapeDtypeStruct((B, 3, _LANE), jnp.float32),
        grid_spec=pltpu.PrefetchScalarGridSpec(
            num_scalar_prefetch=0,
            grid=(B,),
            in_specs=[pl.BlockSpec((1, Rs, _LANE), lambda i: (i, 0, 0)),
                      pl.BlockSpec((1, Rs, _LANE), lambda i: (i, 0, 0))],
            out_specs=pl.BlockSpec((1, 3, _LANE), lambda i: (i, 0, 0)),
        ),
        compiler_params=pltpu.CompilerParams(
            dimension_semantics=("parallel",),
            vmem_limit_bytes=32 * 1024 * 1024,
        ),
    )(sp, sm)
    return _finish_dice(dice_p)


# ---------------------------- SegMIMLoss wrapper -----------------------------
def segmim_loss(outputs, images, masks, seg_masks):
    loss = {}
    if 'mim' in outputs:
        mim, textseg = _segmim_fused(images, outputs['mim'][0], masks,
                                     outputs['textseg'], seg_masks)
        loss['mim'] = mim
        loss['textseg'] = textseg
    else:
        loss['textseg'] = _dice_only(outputs['textseg'], seg_masks)
    return loss


# ------------------------------- pure-JAX ref --------------------------------
def _ref_segmim_loss(outputs, images, masks, seg_masks):
    loss = {}
    if 'mim' in outputs:
        img = images.astype(jnp.float32)
        preds = outputs['mim'][0].astype(jnp.float32)
        l1 = jnp.abs(img - preds)
        m = jnp.repeat(jnp.repeat(masks, PATCH_SIZE, axis=1), PATCH_SIZE, axis=2)
        m = m[:, None, :, :].astype(jnp.float32)
        loss['mim'] = (l1 * m).sum() / (m.sum() + 1e-5) / 3.0
    sp = outputs['textseg'].astype(jnp.float32)
    B = sp.shape[0]
    p = jax.nn.sigmoid(sp.reshape(B, -1))
    t = (1.0 - seg_masks.astype(jnp.float32)).reshape(B, -1)
    a = jnp.sum(p * t, axis=1)
    b = jnp.sum(p * p, axis=1) + 0.001
    c = jnp.sum(t * t, axis=1) + 0.001
    loss['textseg'] = 1.0 - jnp.mean(2.0 * a / (b + c))
    return loss


if __name__ == "__main__":
    key = jax.random.PRNGKey(0)
    k1, k2, k3, k4, k5 = jax.random.split(key, 5)

    B, C, H, W = 2, 3, 16, 16
    Hp, Wp = H // PATCH_SIZE, W // PATCH_SIZE

    # MIM inputs kept in bf16 to exercise the native-dtype (no wrapper upcast) path.
    images = jax.random.normal(k1, (B, C, H, W), dtype=jnp.float32).astype(jnp.bfloat16)
    mim_preds = jax.random.normal(k2, (B, C, H, W), dtype=jnp.float32).astype(jnp.bfloat16)
    masks = (jax.random.uniform(k3, (B, Hp, Wp)) > 0.5).astype(jnp.float32)
    seg_preds = jax.random.normal(k4, (B, 1, H, W), dtype=jnp.float32)
    seg_masks = (jax.random.uniform(k5, (B, 1, H, W)) > 0.5).astype(jnp.float32)

    outputs = {'mim': (mim_preds,), 'textseg': seg_preds}

    loss = segmim_loss(outputs, images, masks, seg_masks)
    loss = jax.tree_util.tree_map(jax.block_until_ready, loss)

    ref = _ref_segmim_loss(outputs, images, masks, seg_masks)
    assert jnp.allclose(loss['mim'], ref['mim'], rtol=1e-5, atol=1e-5), (loss, ref)
    assert jnp.allclose(loss['textseg'], ref['textseg'], rtol=1e-5, atol=1e-5), (loss, ref)

    # dice-only path ('mim' absent) must also work
    loss2 = segmim_loss({'textseg': seg_preds}, images, masks, seg_masks)
    loss2 = jax.tree_util.tree_map(jax.block_until_ready, loss2)
    assert jnp.allclose(loss2['textseg'], ref['textseg'], rtol=1e-5, atol=1e-5), (loss2, ref)

    print("KERNEL_OK")
</pallas_src>

<mosaic_0001>
module attributes {stable_mosaic.version = 11 : i64} {
  func.func @kernel(%arg0: i32, %arg1: memref<1x3x8x128xbf16, #tpu.memory_space<vmem>>, %arg2: memref<1x3x8x128xbf16, #tpu.memory_space<vmem>>, %arg3: memref<1x8x128xbf16, #tpu.memory_space<vmem>>, %arg4: memref<1x8x128xf32, #tpu.memory_space<vmem>>, %arg5: memref<1x8x128xf32, #tpu.memory_space<vmem>>, %arg6: memref<1x1x128xf32, #tpu.memory_space<vmem>>, %arg7: memref<1x3x128xf32, #tpu.memory_space<vmem>>) attributes {dimension_semantics = [#tpu.dimension_semantics<parallel>], iteration_bounds = array<i64: 2>, scalar_prefetch = 0 : i64, scratch_operands = 0 : i64, tpu.core_type = #tpu.core_type<tc>, window_params = [{transform_indices = @transform_0, window_bounds = array<i64: 1, 3, 8, 128>}, {transform_indices = @transform_1, window_bounds = array<i64: 1, 3, 8, 128>}, {transform_indices = @transform_2, window_bounds = array<i64: 1, 8, 128>}, {transform_indices = @transform_3, window_bounds = array<i64: 1, 8, 128>}, {transform_indices = @transform_4, window_bounds = array<i64: 1, 8, 128>}, {transform_indices = @transform_5, window_bounds = array<i64: 1, 1, 128>}, {transform_indices = @transform_6, window_bounds = array<i64: 1, 3, 128>}]} {
    %cst = arith.constant 0.000000e+00 : f32
    %0 = vector.broadcast %cst : f32 to vector<1x128xf32>
    %c0 = arith.constant 0 : index
    %c0_0 = arith.constant 0 : index
    %c0_1 = arith.constant 0 : index
    %c0_2 = arith.constant 0 : index
    %1 = vector.load %arg1[%c0, %c0_0, %c0_1, %c0_2] : memref<1x3x8x128xbf16, #tpu.memory_space<vmem>>, vector<1x3x8x128xbf16>
    %2 = vector.shape_cast %1 : vector<1x3x8x128xbf16> to vector<3x8x128xbf16>
    %3 = arith.extf %2 : vector<3x8x128xbf16> to vector<3x8x128xf32>
    %c0_3 = arith.constant 0 : index
    %c0_4 = arith.constant 0 : index
    %c0_5 = arith.constant 0 : index
    %c0_6 = arith.constant 0 : index
    %4 = vector.load %arg2[%c0_3, %c0_4, %c0_5, %c0_6] : memref<1x3x8x128xbf16, #tpu.memory_space<vmem>>, vector<1x3x8x128xbf16>
    %5 = vector.shape_cast %4 : vector<1x3x8x128xbf16> to vector<3x8x128xbf16>
    %6 = arith.extf %5 : vector<3x8x128xbf16> to vector<3x8x128xf32>
    %c0_7 = arith.constant 0 : index
    %c0_8 = arith.constant 0 : index
    %c0_9 = arith.constant 0 : index
    %7 = vector.load %arg3[%c0_7, %c0_8, %c0_9] : memref<1x8x128xbf16, #tpu.memory_space<vmem>>, vector<1x8x128xbf16>
    %8 = vector.shape_cast %7 : vector<1x8x128xbf16> to vector<8x128xbf16>
    %9 = arith.extf %8 : vector<8x128xbf16> to vector<8x128xf32>
    %10 = arith.subf %3, %6 : vector<3x8x128xf32>
    %11 = math.absf %10 : vector<3x8x128xf32>
    %12 = vector.shape_cast %9 : vector<8x128xf32> to vector<1x8x128xf32>
    %13 = vector.broadcast %12 : vector<1x8x128xf32> to vector<3x8x128xf32>
    %14 = arith.mulf %11, %13 : vector<3x8x128xf32>
    %15 = vector.shape_cast %14 : vector<3x8x128xf32> to vector<24x128xf32>
    %cst_10 = arith.constant dense<0.000000e+00> : vector<128xf32>
    %16 = vector.multi_reduction <add>, %15, %cst_10 [0] : vector<24x128xf32> to vector<128xf32>
    %17 = vector.shape_cast %16 : vector<128xf32> to vector<1x128xf32>
    %18 = arith.addf %0, %17 : vector<1x128xf32>
    %c0_11 = arith.constant 0 : index
    %c0_12 = arith.constant 0 : index
    %c0_13 = arith.constant 0 : index
    %19 = vector.load %arg6[%c0_11, %c0_12, %c0_13] : memref<1x1x128xf32, #tpu.memory_space<vmem>>, vector<1x1x128xf32>
    %20 = vector.shape_cast %19 : vector<1x1x128xf32> to vector<1x128xf32>
    %21 = vector.shape_cast %18 : vector<1x128xf32> to vector<1x1x128xf32>
    tpu.vector_store %arg6[%c0_11, %c0_12, %c0_13], %21 {strides = array<i32>} : memref<1x1x128xf32, #tpu.memory_space<vmem>>, vector<1x1x128xf32>,
    %cst_14 = arith.constant 0.000000e+00 : f32
    %22 = vector.broadcast %cst_14 : f32 to vector<1x128xf32>
    %c0_15 = arith.constant 0 : index
    %c0_16 = arith.constant 0 : index
    %c0_17 = arith.constant 0 : index
    %23 = vector.load %arg4[%c0_15, %c0_16, %c0_17] : memref<1x8x128xf32, #tpu.memory_space<vmem>>, vector<1x8x128xf32>
    %24 = vector.shape_cast %23 : vector<1x8x128xf32> to vector<8x128xf32>
    %c0_18 = arith.constant 0 : index
    %c0_19 = arith.constant 0 : index
    %c0_20 = arith.constant 0 : index
    %25 = vector.load %arg5[%c0_18, %c0_19, %c0_20] : memref<1x8x128xf32, #tpu.memory_space<vmem>>, vector<1x8x128xf32>
    %26 = vector.shape_cast %25 : vector<1x8x128xf32> to vector<8x128xf32>
    %27 = arith.negf %24 : vector<8x128xf32>
    %28 = math.exp %27 : vector<8x128xf32>
    %cst_21 = arith.constant 1.000000e+00 : f32
    %29 = vector.broadcast %cst_21 : f32 to vector<8x128xf32>
    %30 = arith.addf %29, %28 : vector<8x128xf32>
    %31 = arith.divf %29, %30 : vector<8x128xf32>
    %cst_22 = arith.constant 1.000000e+00 : f32
    %32 = vector.broadcast %cst_22 : f32 to vector<8x128xf32>
    %33 = arith.subf %32, %26 : vector<8x128xf32>
    %34 = arith.mulf %31, %33 : vector<8x128xf32>
    %cst_23 = arith.constant dense<0.000000e+00> : vector<128xf32>
    %35 = vector.multi_reduction <add>, %34, %cst_23 [0] : vector<8x128xf32> to vector<128xf32>
    %36 = vector.shape_cast %35 : vector<128xf32> to vector<1x128xf32>
    %37 = arith.addf %22, %36 : vector<1x128xf32>
    %38 = arith.mulf %31, %31 : vector<8x128xf32>
    %cst_24 = arith.constant dense<0.000000e+00> : vector<128xf32>
    %39 = vector.multi_reduction <add>, %38, %cst_24 [0] : vector<8x128xf32> to vector<128xf32>
    %40 = vector.shape_cast %39 : vector<128xf32> to vector<1x128xf32>
    %41 = arith.addf %22, %40 : vector<1x128xf32>
    %42 = arith.mulf %33, %33 : vector<8x128xf32>
    %cst_25 = arith.constant dense<0.000000e+00> : vector<128xf32>
    %43 = vector.multi_reduction <add>, %42, %cst_25 [0] : vector<8x128xf32> to vector<128xf32>
    %44 = vector.shape_cast %43 : vector<128xf32> to vector<1x128xf32>
    %45 = arith.addf %22, %44 : vector<1x128xf32>
    %46 = tpu.concatenate %37, %41, %45 in 0 : vector<1x128xf32>, vector<1x128xf32>, vector<1x128xf32> -> vector<3x128xf32>
    %c0_26 = arith.constant 0 : index
    %c0_27 = arith.constant 0 : index
    %c0_28 = arith.constant 0 : index
    %47 = vector.load %arg7[%c0_26, %c0_27, %c0_28] : memref<1x3x128xf32, #tpu.memory_space<vmem>>, vector<1x3x128xf32>
    %48 = vector.shape_cast %47 : vector<1x3x128xf32> to vector<3x128xf32>
    %49 = vector.shape_cast %46 : vector<3x128xf32> to vector<1x3x128xf32>
    tpu.vector_store %arg7[%c0_26, %c0_27, %c0_28], %49 {strides = array<i32>} : memref<1x3x128xf32, #tpu.memory_space<vmem>>, vector<1x3x128xf32>,
    return
  }
  func.func @transform_0(%arg0: i32) -> (i32, i32, i32, i32) {
    %c0_i32 = arith.constant 0 : i32
    %c0_i32_0 = arith.constant 0 : i32
    %c0_i32_1 = arith.constant 0 : i32
    %c0_i32_2 = arith.constant 0 : i32
    return %arg0, %c0_i32, %c0_i32_0, %c0_i32_1 : i32, i32, i32, i32
  }
  func.func @transform_1(%arg0: i32) -> (i32, i32, i32, i32) {
    %c0_i32 = arith.constant 0 : i32
    %c0_i32_0 = arith.constant 0 : i32
    %c0_i32_1 = arith.constant 0 : i32
    %c0_i32_2 = arith.constant 0 : i32
    return %arg0, %c0_i32, %c0_i32_0, %c0_i32_1 : i32, i32, i32, i32
  }
  func.func @transform_2(%arg0: i32) -> (i32, i32, i32) {
    %c0_i32 = arith.constant 0 : i32
    %c0_i32_0 = arith.constant 0 : i32
    %c0_i32_1 = arith.constant 0 : i32
    return %arg0, %c0_i32, %c0_i32_0 : i32, i32, i32
  }
  func.func @transform_3(%arg0: i32) -> (i32, i32, i32) {
    %c0_i32 = arith.constant 0 : i32
    %c0_i32_0 = arith.constant 0 : i32
    %c0_i32_1 = arith.constant 0 : i32
    return %arg0, %c0_i32, %c0_i32_0 : i32, i32, i32
  }
  func.func @transform_4(%arg0: i32) -> (i32, i32, i32) {
    %c0_i32 = arith.constant 0 : i32
    %c0_i32_0 = arith.constant 0 : i32
    %c0_i32_1 = arith.constant 0 : i32
    return %arg0, %c0_i32, %c0_i32_0 : i32, i32, i32
  }
  func.func @transform_5(%arg0: i32) -> (i32, i32, i32) {
    %c0_i32 = arith.constant 0 : i32
    %c0_i32_0 = arith.constant 0 : i32
    %c0_i32_1 = arith.constant 0 : i32
    return %arg0, %c0_i32, %c0_i32_0 : i32, i32, i32
  }
  func.func @transform_6(%arg0: i32) -> (i32, i32, i32) {
    %c0_i32 = arith.constant 0 : i32
    %c0_i32_0 = arith.constant 0 : i32
    %c0_i32_1 = arith.constant 0 : i32
    return %arg0, %c0_i32, %c0_i32_0 : i32, i32, i32
  }
}

</mosaic_0001>

<llo_original>
// kernel: tpu_custom_call.1
$region0: #{tpu_custom_call.1}
  #allocation0 [shape = 'u32[]', space=smem, size = 0x4, offset = 0x4, fixed_abs, tag = 'smem constant byte address 0x4 - core index']
  #allocation1 [shape = 'u32[144,128]{1,0:T(1,128)}', space=vmem, size = 0x12000, scoped, tag = 'internal scratch']
  %s0 = inlined_call_operand.hbm [shape: bf16[2,3,8,128], index: 0, kind: input, shape index: {}]
  %s1 = inlined_call_operand.hbm [shape: bf16[2,3,8,128], index: 1, kind: input, shape index: {}]
  %s2 = inlined_call_operand.hbm [shape: bf16[2,8,128], index: 2, kind: input, shape index: {}]
  %s3 = inlined_call_operand.hbm [shape: f32[2,8,128], index: 3, kind: input, shape index: {}]
  %s4 = inlined_call_operand.hbm [shape: f32[2,8,128], index: 4, kind: input, shape index: {}]
  %s5 = inlined_call_operand.hbm [shape: f32[2,1,128], index: 5, kind: output, shape index: {0}]
  %s6 = inlined_call_operand.vmem [shape: f32[2,3,128], index: 6, kind: output, shape index: {1}]
  %7 = xla_tuple %s5, %s6
  %s8 = sld [smem:[#allocation0]]
  $region81: #{tpu_custom_call.1} parent=0
    _
  %s10 = ssub.s32 1, %s8
  %s11 = scalar_select 0, %s10, %s8
  $region1: #{tpu_custom_call.1} parent=0
    #allocation2 [shape = 'u8[12288]{0}', space=vmem, size = 0x3000, scoped, tag = 'input window, operand 0']
    #allocation3 [shape = 's32[2]{0}', space=sflag, size = 0x8, scoped, tag = 'scoped memory for tpu_custom_call.1']
    #allocation4 [shape = 's32[2]{0}', space=sflag, size = 0x8, scoped, tag = 'scoped memory for tpu_custom_call.1']
    #allocation5 [shape = 'u8[12288]{0}', space=vmem, size = 0x3000, scoped, tag = 'input window, operand 1']
    #allocation6 [shape = 's32[2]{0}', space=sflag, size = 0x8, scoped, tag = 'scoped memory for tpu_custom_call.1']
    #allocation7 [shape = 'u8[4096]{0}', space=vmem, size = 0x1000, scoped, tag = 'input window, operand 2']
    #allocation8 [shape = 'u8[8192]{0}', space=vmem, size = 0x2000, scoped, tag = 'input window, operand 3']
    #allocation9 [shape = 's32[2]{0}', space=sflag, size = 0x8, scoped, tag = 'scoped memory for tpu_custom_call.1']
    #allocation10 [shape = 'u8[8192]{0}', space=vmem, size = 0x2000, scoped, tag = 'input window, operand 4']
    #allocation11 [shape = 'u8[1024]{0}', space=vmem, size = 0x400, scoped, tag = 'output window, operand 0']
    %12 = vsyncpa [#allocation3], 0
    %s13 = scalar_lea.sflag [#allocation3], 1
    %14 = vsyncpa %s13, 0
    %15 = vsyncpa [#allocation6], 0
    %s16 = scalar_lea.sflag [#allocation6], 1
    %17 = vsyncpa %s16, 0
    %18 = vsyncpa [#allocation9], 0
    %s19 = scalar_lea.sflag [#allocation9], 1
    %20 = vsyncpa %s19, 0
    %21 = vsyncpa [#allocation4], 0
    %s22 = scalar_lea.sflag [#allocation4], 1
    %23 = vsyncpa %s22, 0
    loop: start=0, step=1, limit=4
    $region2: #{tpu_custom_call.1} parent=1 // loop_pre_header
      _
    $region3: #{tpu_custom_call.1} parent=1 // loop_header
      %s25 = sphi 0, %s29
      %p26 = scmp.ge.s32.totalorder %s25, 4
      %s35 = sphi 0, %s37
      %s38 = sphi 0, %s35
      %s39 = sphi 0, %s38
      %s55 = sphi 0, %s39
      %s61 = sphi 0, %s63
      %s64 = sphi 0, %s61
      %s65 = sphi 0, %s64
      %s81 = sphi 0, %s65
      %s87 = sphi 0, %s89
      %s90 = sphi 0, %s87
      %s91 = sphi 0, %s90
      %s107 = sphi 0, %s91
      %s113 = sphi 0, %s115
      %s116 = sphi 0, %s113
      %s117 = sphi 0, %s116
      %s133 = sphi 0, %s117
      %s139 = sphi 0, %s141
      %s142 = sphi 0, %s139
      %s143 = sphi 0, %s142
      %s159 = sphi 0, %s143
      %s165 = sphi 0, %s167
      %s168 = sphi 0, %s165
      %s169 = sphi 0, %s168
      %s185 = sphi 0, %s169
      %s191 = sphi 0, %s193
      %s194 = sphi 0, %s191
      %s195 = sphi 0, %s194
      %s211 = sphi 0, %s195
    $region4: #{tpu_custom_call.1} parent=1 // loop_header_branch
      %28 = sbr.rel (%p26) target = $region8
    $region5: #{tpu_custom_call.1} parent=1 // loop_body
      %s30 = ssub.s32 %s25, 1
      %s31 = ssub.s32 %s25, 2
      %s32 = sadd.s32 %s25, 1
      %s33 = ssub.s32 %s25, %s32
      %p34 = scmp.eq.s32.totalorder %s33, 0
      %s36 = sadd.s32 %s35, 1
      %s37 = scalar_select %p34, %s35, %s36
      %p40 = pneg %p34
      %p41 = scmp.eq.s32.totalorder %s25, 1
      %p42 = por %p40, %p41
      %p43 = scmp.ne.s32.totalorder %s35, %s38
      %p44 = scmp.eq.s32.totalorder %s25, 0
      %p45 = por %p43, %p44
      %p46 = scmp.ne.s32.totalorder %s35, %s38
      %p47 = scmp.eq.s32.totalorder %s30, 1
      %p48 = por %p46, %p47
      %p49 = scmp.ne.s32.totalorder %s38, %s39
      %p50 = scmp.eq.s32.totalorder %s30, 0
      %p51 = por %p49, %p50
      %p52 = scmp.ne.s32.totalorder %s38, %s39
      %p53 = scmp.eq.s32.totalorder %s31, 1
      %p54 = por %p52, %p53
      %p56 = scmp.ne.s32.totalorder %s39, %s55
      %p57 = scmp.eq.s32.totalorder %s31, 0
      %p58 = por %p56, %p57
      %s59 = ssub.s32 %s25, %s32
      %p60 = scmp.eq.s32.totalorder %s59, 0
      %s62 = sadd.s32 %s61, 1
      %s63 = scalar_select %p60, %s61, %s62
      %p66 = pneg %p60
      %p67 = scmp.eq.s32.totalorder %s25, 1
      %p68 = por %p66, %p67
      %p69 = scmp.ne.s32.totalorder %s61, %s64
      %p70 = scmp.eq.s32.totalorder %s25, 0
      %p71 = por %p69, %p70
      %p72 = scmp.ne.s32.totalorder %s61, %s64
      %p73 = scmp.eq.s32.totalorder %s30, 1
      %p74 = por %p72, %p73
      %p75 = scmp.ne.s32.totalorder %s64, %s65
      %p76 = scmp.eq.s32.totalorder %s30, 0
      %p77 = por %p75, %p76
      %p78 = scmp.ne.s32.totalorder %s64, %s65
      %p79 = scmp.eq.s32.totalorder %s31, 1
      %p80 = por %p78, %p79
      %p82 = scmp.ne.s32.totalorder %s65, %s81
      %p83 = scmp.eq.s32.totalorder %s31, 0
      %p84 = por %p82, %p83
      %s85 = ssub.s32 %s25, %s32
      %p86 = scmp.eq.s32.totalorder %s85, 0
      %s88 = sadd.s32 %s87, 1
      %s89 = scalar_select %p86, %s87, %s88
      %p92 = pneg %p86
      %p93 = scmp.eq.s32.totalorder %s25, 1
      %p94 = por %p92, %p93
      %p95 = scmp.ne.s32.totalorder %s87, %s90
      %p96 = scmp.eq.s32.totalorder %s25, 0
      %p97 = por %p95, %p96
      %p98 = scmp.ne.s32.totalorder %s87, %s90
      %p99 = scmp.eq.s32.totalorder %s30, 1
      %p100 = por %p98, %p99
      %p101 = scmp.ne.s32.totalorder %s90, %s91
      %p102 = scmp.eq.s32.totalorder %s30, 0
      %p103 = por %p101, %p102
      %p104 = scmp.ne.s32.totalorder %s90, %s91
      %p105 = scmp.eq.s32.totalorder %s31, 1
      %p106 = por %p104, %p105
      %p108 = scmp.ne.s32.totalorder %s91, %s107
      %p109 = scmp.eq.s32.totalorder %s31, 0
      %p110 = por %p108, %p109
      %s111 = ssub.s32 %s25, %s32
      %p112 = scmp.eq.s32.totalorder %s111, 0
      %s114 = sadd.s32 %s113, 1
      %s115 = scalar_select %p112, %s113, %s114
      %p118 = pneg %p112
      %p119 = scmp.eq.s32.totalorder %s25, 1
      %p120 = por %p118, %p119
      %p121 = scmp.ne.s32.totalorder %s113, %s116
      %p122 = scmp.eq.s32.totalorder %s25, 0
      %p123 = por %p121, %p122
      %p124 = scmp.ne.s32.totalorder %s113, %s116
      %p125 = scmp.eq.s32.totalorder %s30, 1
      %p126 = por %p124, %p125
      %p127 = scmp.ne.s32.totalorder %s116, %s117
      %p128 = scmp.eq.s32.totalorder %s30, 0
      %p129 = por %p127, %p128
      %p130 = scmp.ne.s32.totalorder %s116, %s117
      %p131 = scmp.eq.s32.totalorder %s31, 1
      %p132 = por %p130, %p131
      %p134 = scmp.ne.s32.totalorder %s117, %s133
      %p135 = scmp.eq.s32.totalorder %s31, 0
      %p136 = por %p134, %p135
      %s137 = ssub.s32 %s25, %s32
      %p138 = scmp.eq.s32.totalorder %s137, 0
      %s140 = sadd.s32 %s139, 1
      %s141 = scalar_select %p138, %s139, %s140
      %p144 = pneg %p138
      %p145 = scmp.eq.s32.totalorder %s25, 1
      %p146 = por %p144, %p145
      %p147 = scmp.ne.s32.totalorder %s139, %s142
      %p148 = scmp.eq.s32.totalorder %s25, 0
      %p149 = por %p147, %p148
      %p150 = scmp.ne.s32.totalorder %s139, %s142
      %p151 = scmp.eq.s32.totalorder %s30, 1
      %p152 = por %p150, %p151
      %p153 = scmp.ne.s32.totalorder %s142, %s143
      %p154 = scmp.eq.s32.totalorder %s30, 0
      %p155 = por %p153, %p154
      %p156 = scmp.ne.s32.totalorder %s142, %s143
      %p157 = scmp.eq.s32.totalorder %s31, 1
      %p158 = por %p156, %p157
      %p160 = scmp.ne.s32.totalorder %s143, %s159
      %p161 = scmp.eq.s32.totalorder %s31, 0
      %p162 = por %p160, %p161
      %s163 = ssub.s32 %s25, %s32
      %p164 = scmp.eq.s32.totalorder %s163, 0
      %s166 = sadd.s32 %s165, 1
      %s167 = scalar_select %p164, %s165, %s166
      %p170 = pneg %p164
      %p171 = scmp.eq.s32.totalorder %s25, 1
      %p172 = por %p170, %p171
      %p173 = scmp.ne.s32.totalorder %s165, %s168
      %p174 = scmp.eq.s32.totalorder %s25, 0
      %p175 = por %p173, %p174
      %p176 = scmp.ne.s32.totalorder %s165, %s168
      %p177 = scmp.eq.s32.totalorder %s30, 1
      %p178 = por %p176, %p177
      %p179 = scmp.ne.s32.totalorder %s168, %s169
      %p180 = scmp.eq.s32.totalorder %s30, 0
      %p181 = por %p179, %p180
      %p182 = scmp.ne.s32.totalorder %s168, %s169
      %p183 = scmp.eq.s32.totalorder %s31, 1
      %p184 = por %p182, %p183
      %p186 = scmp.ne.s32.totalorder %s169, %s185
      %p187 = scmp.eq.s32.totalorder %s31, 0
      %p188 = por %p186, %p187
      %s189 = ssub.s32 %s25, %s32
      %p190 = scmp.eq.s32.totalorder %s189, 0
      %s192 = sadd.s32 %s191, 1
      %s193 = scalar_select %p190, %s191, %s192
      %p196 = pneg %p190
      %p197 = scmp.eq.s32.totalorder %s25, 1
      %p198 = por %p196, %p197
      %p199 = scmp.ne.s32.totalorder %s191, %s194
      %p200 = scmp.eq.s32.totalorder %s25, 0
      %p201 = por %p199, %p200
      %p202 = scmp.ne.s32.totalorder %s191, %s194
      %p203 = scmp.eq.s32.totalorder %s30, 1
      %p204 = por %p202, %p203
      %p205 = scmp.ne.s32.totalorder %s194, %s195
      %p206 = scmp.eq.s32.totalorder %s30, 0
      %p207 = por %p205, %p206
      %p208 = scmp.ne.s32.totalorder %s194, %s195
      %p209 = scmp.eq.s32.totalorder %s31, 1
      %p210 = por %p208, %p209
      %p212 = scmp.ne.s32.totalorder %s195, %s211
      %p213 = scmp.eq.s32.totalorder %s31, 0
      %p214 = por %p212, %p213
      %p215 = scmp.le.s32.totalorder 1, %s25
      %p216 = scmp.lt.s32.totalorder %s25, 3
      %p217 = pnand %p215, %p216
      %p218 = pneg %p217
      // Predicated region
      $region9: #{tpu_custom_call.1} parent=5 // pred_check
        _
      $region10: #{tpu_custom_call.1} parent=5 // pred_check_branch
        %220 = sbr.rel (%p217) target = $region12
      $region11: #{tpu_custom_call.1} parent=5 // pred_region
        %s221 = ssub.s32 %s25, 1
      $region12: #{tpu_custom_call.1} parent=5 // pred_fallthru
        _
      %p222 = scmp.lt.s32.totalorder %s25, 2
      // Predicated region
      $region13: #{tpu_custom_call.1} parent=5 // pred_check
        %p223 = pneg %p222
      $region14: #{tpu_custom_call.1} parent=5 // pred_check_branch
        %225 = sbr.rel (%p223) target = $region16
      $region15: #{tpu_custom_call.1} parent=5 // pred_region
        // Predicated region
        $region17: #{tpu_custom_call.1} parent=15 // pred_check
          %p226 = pneg %p45
        $region18: #{tpu_custom_call.1} parent=15 // pred_check_branch
          %228 = sbr.rel (%p226) target = $region20
        $region19: #{tpu_custom_call.1} parent=15 // pred_region
          %s229 = sand.u32 %s35, 1
          %s230 = scalar_lea.sflag [#allocation3], %s229
          %s231 = sand.u32 %s35, 1
          %s232 = smul.addr %s231, 12
          %s233 = scalar_lea.vmem [#allocation2], %s232
          %s235 = ssub.s32 192, 192
          %236 = vsyncadd %s230, %s235
          %s237 = smul.addr %s25, 3
          %s238 = smul.addr %s237, 64
          %s239 = scalar_lea.hbm %s0, %s238
          %s240 = sshll.u32 %s233, 4
          %s241 = int_to_ptr.vmem [resolvable:$true] %s240
          %246 = dma.hbm_to_vmem [thread:$0]  %s239, 192, %s241, %s230, 64, 64, 4
        $region20: #{tpu_custom_call.1} parent=15 // pred_fallthru
          _
        // Predicated region
        $region21: #{tpu_custom_call.1} parent=15 // pred_check
          %p247 = pneg %p71
        $region22: #{tpu_custom_call.1} parent=15 // pred_check_branch
          %249 = sbr.rel (%p247) target = $region24
        $region23: #{tpu_custom_call.1} parent=15 // pred_region
          %s250 = sand.u32 %s25, 1
          %s251 = scalar_lea.sflag [#allocation6], %s250
          %s252 = sand.u32 %s61, 1
          %s253 = smul.addr %s252, 12
          %s254 = scalar_lea.vmem [#allocation5], %s253
          %s256 = ssub.s32 192, 192
          %257 = vsyncadd %s251, %s256
          %s258 = smul.addr %s25, 3
          %s259 = smul.addr %s258, 64
          %s260 = scalar_lea.hbm %s1, %s259
          %s261 = sshll.u32 %s254, 4
          %s262 = int_to_ptr.vmem [resolvable:$true] %s261
          %267 = dma.hbm_to_vmem [thread:$0]  %s260, 192, %s262, %s251, 64, 64, 4
        $region24: #{tpu_custom_call.1} parent=15 // pred_fallthru
          _
        // Predicated region
        $region25: #{tpu_custom_call.1} parent=15 // pred_check
          %p268 = pneg %p97
        $region26: #{tpu_custom_call.1} parent=15 // pred_check_branch
          %270 = sbr.rel (%p268) target = $region28
        $region27: #{tpu_custom_call.1} parent=15 // pred_region
          %s271 = sand.u32 %s25, 1
          %s272 = scalar_lea.sflag [#allocation6], %s271
          %s273 = sand.u32 %s87, 1
          %s274 = smul.addr %s273, 4
          %s275 = scalar_lea.vmem [#allocation7], %s274
          %s277 = ssub.s32 64, 64
          %278 = vsyncadd %s272, %s277
          %s279 = smul.addr %s25, 64
          %s280 = scalar_lea.hbm %s2, %s279
          %s282 = sshll.u32 %s275, 4
          %s283 = int_to_ptr.vmem [resolvable:$true] %s282
          %285 = dma.hbm_to_vmem [thread:$0]  %s280, 64, %s283, %s272
        $region28: #{tpu_custom_call.1} parent=15 // pred_fallthru
          _
        // Predicated region
        $region29: #{tpu_custom_call.1} parent=15 // pred_check
          %p286 = pneg %p123
        $region30: #{tpu_custom_call.1} parent=15 // pred_check_branch
          %288 = sbr.rel (%p286) target = $region32
        $region31: #{tpu_custom_call.1} parent=15 // pred_region
          %s289 = sand.u32 %s25, 1
          %s290 = scalar_lea.sflag [#allocation9], %s289
          %s291 = sand.u32 %s113, 1
          %s292 = smul.addr %s291, 8
          %s293 = scalar_lea.vmem [#allocation8], %s292
          %s295 = ssub.s32 128, 128
          %296 = vsyncadd %s290, %s295
          %s297 = smul.addr %s25, 128
          %s298 = scalar_lea.hbm %s3, %s297
          %s300 = sshll.u32 %s293, 4
          %s301 = int_to_ptr.vmem [resolvable:$true] %s300
          %303 = dma.hbm_to_vmem [thread:$0]  %s298, 128, %s301, %s290
        $region32: #{tpu_custom_call.1} parent=15 // pred_fallthru
          _
        // Predicated region
        $region33: #{tpu_custom_call.1} parent=15 // pred_check
          %p304 = pneg %p149
        $region34: #{tpu_custom_call.1} parent=15 // pred_check_branch
          %306 = sbr.rel (%p304) target = $region36
        $region35: #{tpu_custom_call.1} parent=15 // pred_region
          %s307 = sand.u32 %s25, 1
          %s308 = scalar_lea.sflag [#allocation9], %s307
          %s309 = sand.u32 %s139, 1
          %s310 = smul.addr %s309, 8
          %s311 = scalar_lea.vmem [#allocation10], %s310
          %s313 = ssub.s32 128, 128
          %314 = vsyncadd %s308, %s313
          %s315 = smul.addr %s25, 128
          %s316 = scalar_lea.hbm %s4, %s315
          %s318 = sshll.u32 %s311, 4
          %s319 = int_to_ptr.vmem [resolvable:$true] %s318
          %321 = dma.hbm_to_vmem [thread:$0]  %s316, 128, %s319, %s308
        $region36: #{tpu_custom_call.1} parent=15 // pred_fallthru
          _
      $region16: #{tpu_custom_call.1} parent=5 // pred_fallthru
        _
      %p322 = scmp.le.s32.totalorder 1, %s25
      %p323 = scmp.lt.s32.totalorder %s25, 3
      %p324 = pnand %p322, %p323
      %p325 = pneg %p324
      // Predicated region
      $region37: #{tpu_custom_call.1} parent=5 // pred_check
        _
      $region38: #{tpu_custom_call.1} parent=5 // pred_check_branch
        %327 = sbr.rel (%p324) target = $region40
      $region39: #{tpu_custom_call.1} parent=5 // pred_region
        %s328 = ssub.s32 %s25, 1
        %s329 = sand.u32 %s38, 1
        %s330 = scalar_lea.sflag [#allocation3], %s329
        %s331 = sand.u32 %s38, 1
        %s332 = smul.addr %s331, 12
        %s333 = scalar_lea.vmem [#allocation2], %s332
        // Predicated region
        $region41: #{tpu_custom_call.1} parent=39 // pred_check
          %p334 = pneg %p51
        $region42: #{tpu_custom_call.1} parent=39 // pred_check_branch
          %336 = sbr.rel (%p334) target = $region44
        $region43: #{tpu_custom_call.1} parent=39 // pred_region
          %337 = dma.done %s330, 192
        $region44: #{tpu_custom_call.1} parent=39 // pred_fallthru
          _
        %s338 = sand.u32 %s30, 1
        %s339 = scalar_lea.sflag [#allocation6], %s338
        %s340 = sand.u32 %s64, 1
        %s341 = smul.addr %s340, 12
        %s342 = scalar_lea.vmem [#allocation5], %s341
        // Predicated region
        $region45: #{tpu_custom_call.1} parent=39 // pred_check
          %p343 = pneg %p77
        $region46: #{tpu_custom_call.1} parent=39 // pred_check_branch
          %345 = sbr.rel (%p343) target = $region48
        $region47: #{tpu_custom_call.1} parent=39 // pred_region
          %346 = dma.done %s339, 192
        $region48: #{tpu_custom_call.1} parent=39 // pred_fallthru
          _
        %s347 = sand.u32 %s30, 1
        %s348 = scalar_lea.sflag [#allocation6], %s347
        %s349 = sand.u32 %s90, 1
        %s350 = smul.addr %s349, 4
        %s351 = scalar_lea.vmem [#allocation7], %s350
        // Predicated region
        $region49: #{tpu_custom_call.1} parent=39 // pred_check
          %p352 = pneg %p103
        $region50: #{tpu_custom_call.1} parent=39 // pred_check_branch
          %354 = sbr.rel (%p352) target = $region52
        $region51: #{tpu_custom_call.1} parent=39 // pred_region
          %355 = dma.done %s348, 64
        $region52: #{tpu_custom_call.1} parent=39 // pred_fallthru
          _
        %s356 = sand.u32 %s30, 1
        %s357 = scalar_lea.sflag [#allocation9], %s356
        %s358 = sand.u32 %s116, 1
        %s359 = smul.addr %s358, 8
        %s360 = scalar_lea.vmem [#allocation8], %s359
        // Predicated region
        $region53: #{tpu_custom_call.1} parent=39 // pred_check
          %p361 = pneg %p129
        $region54: #{tpu_custom_call.1} parent=39 // pred_check_branch
          %363 = sbr.rel (%p361) target = $region56
        $region55: #{tpu_custom_call.1} parent=39 // pred_region
          %364 = dma.done %s357, 128
        $region56: #{tpu_custom_call.1} parent=39 // pred_fallthru
          _
        %s365 = sand.u32 %s30, 1
        %s366 = scalar_lea.sflag [#allocation9], %s365
        %s367 = sand.u32 %s142, 1
        %s368 = smul.addr %s367, 8
        %s369 = scalar_lea.vmem [#allocation10], %s368
        // Predicated region
        $region57: #{tpu_custom_call.1} parent=39 // pred_check
          %p370 = pneg %p155
        $region58: #{tpu_custom_call.1} parent=39 // pred_check_branch
          %372 = sbr.rel (%p370) target = $region60
        $region59: #{tpu_custom_call.1} parent=39 // pred_region
          %373 = dma.done %s366, 128
        $region60: #{tpu_custom_call.1} parent=39 // pred_fallthru
          _
        %s374 = sand.u32 %s38, 1
        %s375 = scalar_lea.sflag [#allocation3], %s374
        %s376 = sand.u32 %s38, 1
        %s377 = smul.addr %s376, 12
        %s378 = scalar_lea.vmem [#allocation2], %s377
        %p379 = pneg %p51
        %p380 = pneg %p48
        %s381 = sand.u32 %s30, 1
        %s382 = scalar_lea.sflag [#allocation6], %s381
        %s383 = sand.u32 %s64, 1
        %s384 = smul.addr %s383, 12
        %s385 = scalar_lea.vmem [#allocation5], %s384
        %p386 = pneg %p77
        %p387 = pneg %p74
        %s388 = sand.u32 %s30, 1
        %s389 = scalar_lea.sflag [#allocation6], %s388
        %s390 = sand.u32 %s90, 1
        %s391 = smul.addr %s390, 4
        %s392 = scalar_lea.vmem [#allocation7], %s391
        %p393 = pneg %p103
        %p394 = pneg %p100
        %s395 = sand.u32 %s30, 1
        %s396 = scalar_lea.sflag [#allocation9], %s395
        %s397 = sand.u32 %s116, 1
        %s398 = smul.addr %s397, 8
        %s399 = scalar_lea.vmem [#allocation8], %s398
        %p400 = pneg %p129
        %p401 = pneg %p126
        %s402 = sand.u32 %s30, 1
        %s403 = scalar_lea.sflag [#allocation9], %s402
        %s404 = sand.u32 %s142, 1
        %s405 = smul.addr %s404, 8
        %s406 = scalar_lea.vmem [#allocation10], %s405
        %p407 = pneg %p155
        %p408 = pneg %p152
        %p409 = pneg %p181
        %p410 = pneg %p178
        %s411 = sand.u32 %s168, 1
        %s412 = scalar_lea.sflag [#allocation4], %s411
        %s413 = sand.u32 %s168, 1
        %s414 = scalar_lea.vmem [#allocation11], %s413
        %p415 = pneg %p207
        %p416 = pneg %p204
        %p417 = scmp.lt.s32.totalorder %s30, 1
        %s418 = scalar_select %p417, %s30, 1
        %s419 = smul.addr %s418, 4
        %s420 = scalar_lea.vmem %s6, %s419
        %p421 = scmp.lt.s32.totalorder %s30, 1
        %s422 = scalar_select %p421, %s30, 1
        %s423 = smul.addr %s422, 4
        %s424 = scalar_lea.vmem %s6, %s423
        %v425 = vld [vmem:[%s333] sm:$0xf]
        %v426 = vld [vmem:[%s333 + $0x4] sm:$0xf]
        %v427 = vld [vmem:[%s333 + $0x8] sm:$0xf]
        %v428 = vunpack.c.l.bf16 %v425
        %v429 = vunpack.c.l.bf16 %v426
        %v430 = vunpack.c.l.bf16 %v427
        %v431 = vld [vmem:[%s342] sm:$0xf]
        %v432 = vld [vmem:[%s342 + $0x4] sm:$0xf]
        %v433 = vld [vmem:[%s342 + $0x8] sm:$0xf]
        %v434 = vunpack.c.l.bf16 %v431
        %v435 = vunpack.c.l.bf16 %v432
        %v436 = vunpack.c.l.bf16 %v433
        %v437 = vld [vmem:[%s351] sm:$0xf]
        %v438 = vunpack.c.l.bf16 %v437
        %v439 = vsub.f32 %v428, %v434
        %v440 = vsub.f32 %v429, %v435
        %v441 = vsub.f32 %v430, %v436
        %v442 = vand.u32 2147483647, %v439
        %v443 = vand.u32 2147483647, %v440
        %v444 = vand.u32 2147483647, %v441
        %v445 = vmul.f32 %v442, %v438
        %v446 = vmul.f32 %v443, %v438
        %v447 = vmul.f32 %v444, %v438
        %v448 = vadd.f32 %v445, %v446
        %v449 = vadd.f32 %v448, %v447
        %v450 = vrot.slane %v449, 4
        %v451 = vadd.f32 %v449, %v450
        %v452 = vrot.slane %v451, 2
        %v453 = vadd.f32 %v451, %v452
        %v454 = vrot.slane %v453, 1
        %v455 = vadd.f32 %v453, %v454
        %v456 = vadd.f32 %v455, 0.0
        %457 = vst [vmem:[%s414] sm:$0x1] %v456
        %v458 = vld [vmem:[%s360] sm:$0xff]
        %v459 = vld [vmem:[%s369] sm:$0xff]
        %v460 = vxor.u32 %v458, 2147483648
        %v461 = vmul.f32 %v460, 1.442695
        %v462 = vpow.pop %v461
        %v463 = vadd.f32 %v462, 1.0
        %v464 = vrcp.pop %v463
        %v465 = vmul.f32 1.0, %v464
        %v466 = vsub.f32 1.0, %v459
        %v467 = vmul.f32 %v465, %v466
        %v468 = vrot.slane %v467, 4
        %v469 = vadd.f32 %v467, %v468
        %v470 = vrot.slane %v469, 2
        %v471 = vadd.f32 %v469, %v470
        %v472 = vrot.slane %v471, 1
        %v473 = vadd.f32 %v471, %v472
        %v474 = vadd.f32 %v473, 0.0
        %v475 = vmul.f32 %v465, %v465
        %v476 = vrot.slane %v475, 4
        %v477 = vadd.f32 %v475, %v476
        %v478 = vrot.slane %v477, 2
        %v479 = vadd.f32 %v477, %v478
        %v480 = vrot.slane %v479, 1
        %v481 = vadd.f32 %v479, %v480
        %v482 = vadd.f32 %v481, 0.0
        %v483 = vmul.f32 %v466, %v466
        %v484 = vrot.slane %v483, 4
        %v485 = vadd.f32 %v483, %v484
        %v486 = vrot.slane %v485, 2
        %v487 = vadd.f32 %v485, %v486
        %v488 = vrot.slane %v487, 1
        %v489 = vadd.f32 %v487, %v488
        %v490 = vadd.f32 %v489, 0.0
        %vm491 = vcmask 1040384
        %v492 = vsel %vm491, %v474, %v482
        %vm493 = vcmask 1041408
        %v494 = vsel %vm493, %v492, %v490
        %495 = vst [vmem:[%s424] sm:$0x7] %v494
        %s496 = sand.u32 %s168, 1
        %s497 = scalar_lea.sflag [#allocation4], %s496
        %s498 = sand.u32 %s168, 1
        %s499 = scalar_lea.vmem [#allocation11], %s498
        %p500 = scmp.lt.s32.totalorder %s30, 1
        %s501 = scalar_select %p500, %s30, 1
        %s502 = smul.addr %s501, 4
        %s503 = scalar_lea.vmem %s6, %s502
        // Predicated region
        $region61: #{tpu_custom_call.1} parent=39 // pred_check
          %p504 = pneg %p178
        $region62: #{tpu_custom_call.1} parent=39 // pred_check_branch
          %506 = sbr.rel (%p504) target = $region64
        $region63: #{tpu_custom_call.1} parent=39 // pred_region
          %s508 = ssub.s32 16, 16
          %509 = vsyncadd %s497, %s508
          %s510 = smul.addr %s30, 16
          %s511 = scalar_lea.hbm %s5, %s510
          %s513 = sshll.u32 %s499, 4
          %s514 = int_to_ptr.vmem [resolvable:$true] %s513
          %516 = dma.vmem_to_hbm [thread:$0]  %s514, 16, %s511, %s497
        $region64: #{tpu_custom_call.1} parent=39 // pred_fallthru
          _
        // Predicated region
        $region65: #{tpu_custom_call.1} parent=39 // pred_check
          %p517 = pneg %p204
        $region66: #{tpu_custom_call.1} parent=39 // pred_check_branch
          %519 = sbr.rel (%p517) target = $region68
        $region67: #{tpu_custom_call.1} parent=39 // pred_region
          _
        $region68: #{tpu_custom_call.1} parent=39 // pred_fallthru
          _
      $region40: #{tpu_custom_call.1} parent=5 // pred_fallthru
        _
      %p520 = scmp.le.s32.totalorder 2, %s25
      // Predicated region
      $region69: #{tpu_custom_call.1} parent=5 // pred_check
        %p521 = pneg %p520
      $region70: #{tpu_custom_call.1} parent=5 // pred_check_branch
        %523 = sbr.rel (%p521) target = $region72
      $region71: #{tpu_custom_call.1} parent=5 // pred_region
        %s524 = ssub.s32 %s25, 2
        // Predicated region
        $region73: #{tpu_custom_call.1} parent=71 // pred_check
          %p525 = pneg %p184
        $region74: #{tpu_custom_call.1} parent=71 // pred_check_branch
          %527 = sbr.rel (%p525) target = $region76
        $region75: #{tpu_custom_call.1} parent=71 // pred_region
          %s528 = sand.u32 %s169, 1
          %s529 = scalar_lea.sflag [#allocation4], %s528
          %s530 = sand.u32 %s169, 1
          %s531 = scalar_lea.vmem [#allocation11], %s530
          %532 = dma.done %s529, 16
        $region76: #{tpu_custom_call.1} parent=71 // pred_fallthru
          _
        // Predicated region
        $region77: #{tpu_custom_call.1} parent=71 // pred_check
          %p533 = pneg %p210
        $region78: #{tpu_custom_call.1} parent=71 // pred_check_branch
          %535 = sbr.rel (%p533) target = $region80
        $region79: #{tpu_custom_call.1} parent=71 // pred_region
          %p536 = scmp.lt.s32.totalorder %s31, 1
          %s537 = scalar_select %p536, %s31, 1
          %s538 = smul.addr %s537, 4
          %s539 = scalar_lea.vmem %s6, %s538
        $region80: #{tpu_custom_call.1} parent=71 // pred_fallthru
          _
      $region72: #{tpu_custom_call.1} parent=5 // pred_fallthru
        _
    $region6: #{tpu_custom_call.1} parent=1 // loop_footer
      %s29 = sadd.s32 1, %s25
    $region7: #{tpu_custom_call.1} parent=1 // loop_footer_branch
      %24 = sbr.rel target = $region3
    $region8: #{tpu_custom_call.1} parent=1 // loop_exit
      _
    %540 = vsyncpa [#allocation3], 1
    %s541 = scalar_lea.sflag [#allocation3], 1
    %542 = vsyncpa %s541, 1
    %543 = vsyncpa [#allocation6], 1
    %s544 = scalar_lea.sflag [#allocation6], 1
    %545 = vsyncpa %s544, 1
    %546 = vsyncpa [#allocation9], 1
    %s547 = scalar_lea.sflag [#allocation9], 1
    %548 = vsyncpa %s547, 1
    %549 = vsyncpa [#allocation4], 1
    %s550 = scalar_lea.sflag [#allocation4], 1
    %551 = vsyncpa %s550, 1

</llo_original>
